<compile_context>
chip_gen: v7x
topology: tpu7x:2x2x1
jax: 0.10.0
libtpu: 0.0.40
codegen_flags: <defaults>
</compile_context>

<pallas_src>
import functools

import jax
import jax.numpy as jnp
from jax import lax
from jax.experimental import pallas as pl
from jax.experimental.pallas import tpu as pltpu


_LANE = 128
_MIN_SPLIT_BLOCK_BYTES = 512 * 1024   # never shrink blocks below this to force parallel steps


def _round_up(x, m):
    return -(-x // m) * m


def _sublane_quantum(dtype):
    # native VMEM tile is (8,128) for 4-byte, (16,128) for 2-byte, (32,128) for 1-byte
    return max(8, 32 // jnp.dtype(dtype).itemsize)


@functools.lru_cache(maxsize=None)
def _hw_config():
    """Generation-aware knobs: (target_block_bytes, vmem_limit_bytes, min_grid_steps)."""
    vmem = None
    try:
        info = pltpu.get_tpu_info()
        v = getattr(info, "vmem_capacity_bytes", None)
        if isinstance(v, (int, float)) and v > 0:
            vmem = int(v)
    except Exception:
        vmem = None
    kind = ""
    try:
        kind = jax.devices()[0].device_kind.lower()
    except Exception:
        kind = ""
    # v7x: 64 MiB VMEM per TensorCore, 2 TensorCores share "parallel" grid axes.
    is_multi_tc = ("7" in kind) or (vmem is not None and vmem <= 64 * 1024 * 1024)
    if is_multi_tc:
        # conservative blocks / limit against 64 MiB physical, >=2 steps per core
        return 2 * 1024 * 1024, 32 * 1024 * 1024, 4
    # v5e / v6e: 128 MiB VMEM, single TensorCore -> bigger blocks, no forced split
    return 4 * 1024 * 1024, 64 * 1024 * 1024, 1


# ----------------------------------------------------------------------------
# Kernels
# ----------------------------------------------------------------------------
def _ln_rows_kernel(x_ref, w_ref, b_ref, o_ref, *, eps):
    """channels_last: rows on sublanes, C on lanes. Block (tm, C), reduce over lanes."""
    x = x_ref[...].astype(jnp.float32)                       # (tm, C)
    inv_c = 1.0 / x.shape[-1]
    mean = jnp.sum(x, axis=-1, keepdims=True) * inv_c        # (tm, 1)
    msq = jnp.sum(x * x, axis=-1, keepdims=True) * inv_c     # E[x^2]
    var = jnp.maximum(msq - mean * mean, 0.0)                # biased var (matches torch)
    inv = lax.rsqrt(var + eps)                               # EUP op
    w = w_ref[...].astype(jnp.float32)                       # (1, C)
    b = b_ref[...].astype(jnp.float32)                       # (1, C)
    o_ref[...] = ((x - mean) * (inv * w) + b).astype(o_ref.dtype)


def _ln_seg_kernel(x_ref, w_ref, b_ref, o_ref, *, eps, c):
    """channels_last with small C packed g=128//c original rows per 128-lane row.
    Per-segment stats via a block-diagonal averaging matmul on the (idle) MXU."""
    x = x_ref[...].astype(jnp.float32)                       # (tm, 128)
    L = x.shape[-1]
    # P[i, j] = 1/c if lanes i and j belong to the same original row (segment).
    row_seg = lax.broadcasted_iota(jnp.int32, (L, L), 0) // c
    col_seg = lax.broadcasted_iota(jnp.int32, (L, L), 1) // c
    P = jnp.where(row_seg == col_seg, 1.0 / c, 0.0).astype(jnp.float32)
    mean = jnp.dot(x, P, preferred_element_type=jnp.float32,
                   precision=lax.Precision.HIGHEST)          # per-segment mean, broadcast
    msq = jnp.dot(x * x, P, preferred_element_type=jnp.float32,
                  precision=lax.Precision.HIGHEST)           # per-segment E[x^2], broadcast
    var = jnp.maximum(msq - mean * mean, 0.0)
    inv = lax.rsqrt(var + eps)
    w = w_ref[...].astype(jnp.float32)                       # (1, 128) = weight tiled g times
    b = b_ref[...].astype(jnp.float32)
    o_ref[...] = ((x - mean) * (inv * w) + b).astype(o_ref.dtype)


def _ln_cfirst_kernel(x_ref, w_ref, b_ref, o_ref, *, eps):
    """channels_first: reduce over the channel (sublane) axis. Block (bt, C, ts)."""
    x = x_ref[...].astype(jnp.float32)                       # (bt, C, ts)
    inv_c = 1.0 / x.shape[1]
    mean = jnp.sum(x, axis=1, keepdims=True) * inv_c         # (bt, 1, ts)
    msq = jnp.sum(x * x, axis=1, keepdims=True) * inv_c
    var = jnp.maximum(msq - mean * mean, 0.0)
    inv = lax.rsqrt(var + eps)
    w = w_ref[...].astype(jnp.float32)[None, :, :]           # (1, C, 1)
    b = b_ref[...].astype(jnp.float32)[None, :, :]
    o_ref[...] = ((x - mean) * inv * w + b).astype(o_ref.dtype)


# ----------------------------------------------------------------------------
# Shared row-tiled launcher (channels_last paths)
# ----------------------------------------------------------------------------
def _run_rows(kernel, x2d, w2d, b2d, target_bytes, vmem_limit, min_steps):
    N, L = x2d.shape
    itemsize = jnp.dtype(x2d.dtype).itemsize
    sub = _sublane_quantum(x2d.dtype)
    # Size the block against its *VMEM* footprint (lanes pad to 128).
    vmem_row_bytes = max(_round_up(L, _LANE) * itemsize, 1)

    tm = max(sub, (target_bytes // vmem_row_bytes) // sub * sub)
    tm = min(tm, _round_up(N, sub))
    if min_steps > 1 and pl.cdiv(N, tm) < min_steps:
        # split so every TensorCore gets >=2 blocks, but keep blocks >= ~512 KiB
        min_rows = _round_up(max(1, pl.cdiv(_MIN_SPLIT_BLOCK_BYTES, vmem_row_bytes)), sub)
        want = _round_up(max(1, pl.cdiv(N, min_steps)), sub)
        tm = min(tm, max(want, min_rows))
    if tm >= N:
        tm = N          # single full-extent block (always a legal block shape)

    grid = (pl.cdiv(N, tm),)   # ragged grid: tail block's OOB rows are masked on store
    return pl.pallas_call(
        kernel,
        out_shape=jax.ShapeDtypeStruct((N, L), x2d.dtype),
        grid_spec=pltpu.PrefetchScalarGridSpec(
            num_scalar_prefetch=0,
            grid=grid,
            in_specs=[
                pl.BlockSpec((tm, L), lambda i: (i, 0)),
                pl.BlockSpec((1, L), lambda i: (0, 0)),
                pl.BlockSpec((1, L), lambda i: (0, 0)),
            ],
            out_specs=pl.BlockSpec((tm, L), lambda i: (i, 0)),
        ),
        compiler_params=pltpu.CompilerParams(
            dimension_semantics=("parallel",),
            vmem_limit_bytes=vmem_limit),
    )(x2d, w2d, b2d)


# ----------------------------------------------------------------------------
# channels_last wrapper
# ----------------------------------------------------------------------------
def layer_norm_channels_last(x, weight, bias, eps=1e-6):
    """F.layer_norm(x, (C,), weight, bias, eps) with C = x.shape[-1]."""
    orig_shape = x.shape
    C = orig_shape[-1]
    xf = x.reshape(-1, C)        # free reshape (contiguous)
    N = xf.shape[0]
    target_bytes, vmem_limit, min_steps = _hw_config()

    g = _LANE // C if (0 < C < _LANE and _LANE % C == 0) else 0
    if g > 0 and N > 0 and N % g == 0:
        # Pack g consecutive rows into one 128-lane row (free reshape of a
        # contiguous array) -> lane-dense loads/stores, no wrapper transpose.
        xp = xf.reshape(N // g, _LANE)
        wp = jnp.tile(weight.reshape(1, C), (1, g))          # (1, 128)
        bp = jnp.tile(bias.reshape(1, C), (1, g))
        out = _run_rows(functools.partial(_ln_seg_kernel, eps=eps, c=C),
                        xp, wp, bp, target_bytes, vmem_limit, min_steps)
        return out.reshape(orig_shape)

    # General path: rows on sublanes, C on lanes.  For C < 128 the output
    # stores are lane-masked (store-slot cost only; kernel stays HBM-bound).
    w2 = weight.reshape(1, C)
    b2 = bias.reshape(1, C)
    out = _run_rows(functools.partial(_ln_rows_kernel, eps=eps),
                    xf, w2, b2, target_bytes, vmem_limit, min_steps)
    return out.reshape(orig_shape)


# ----------------------------------------------------------------------------
# channels_first wrapper
# ----------------------------------------------------------------------------
def layer_norm_channels_first(x, weight, bias, eps=1e-6):
    """LayerNorm over dim 1 of an NCHW tensor (the module's manual path)."""
    B, C, H, W = x.shape
    HW = H * W
    xf = x.reshape(B, C, HW)     # free reshape (contiguous)
    itemsize = jnp.dtype(x.dtype).itemsize
    target_bytes, vmem_limit, min_steps = _hw_config()

    sub = _sublane_quantum(x.dtype)
    C_pad = _round_up(C, sub)    # sublane-padded channel count for VMEM accounting

    # spatial (lane) tile
    if HW <= _LANE:
        ts = HW
    else:
        lane_cap = max(_LANE, (target_bytes // max(C_pad * itemsize, 1)) // _LANE * _LANE)
        ts = min(_round_up(HW, _LANE), lane_cap)
        if ts >= HW:
            ts = HW
    ts_vmem = _round_up(ts, _LANE)
    blk_bytes_per_batch = C_pad * ts_vmem * itemsize

    # batch tile: fill the per-buffer budget with the padded footprint
    bt = max(1, target_bytes // blk_bytes_per_batch)
    bt = min(bt, B)

    n_s = pl.cdiv(HW, ts)
    if min_steps > 1 and n_s * pl.cdiv(B, bt) < min_steps:
        # split the batch so both v7x TensorCores get >=2 blocks, blocks >= ~512 KiB
        min_bt = max(1, pl.cdiv(_MIN_SPLIT_BLOCK_BYTES, blk_bytes_per_batch))
        k = pl.cdiv(min_steps, n_s)
        want_bt = max(1, B // k)
        bt = min(bt, max(want_bt, min_bt))

    grid = (pl.cdiv(B, bt), pl.cdiv(HW, ts))   # ragged grids; OOB tails masked on store

    w2 = weight.reshape(C, 1)
    b2 = bias.reshape(C, 1)

    out = pl.pallas_call(
        functools.partial(_ln_cfirst_kernel, eps=eps),
        out_shape=jax.ShapeDtypeStruct((B, C, HW), x.dtype),
        grid_spec=pltpu.PrefetchScalarGridSpec(
            num_scalar_prefetch=0,
            grid=grid,
            in_specs=[
                pl.BlockSpec((bt, C, ts), lambda b, s: (b, 0, s)),
                pl.BlockSpec((C, 1), lambda b, s: (0, 0)),
                pl.BlockSpec((C, 1), lambda b, s: (0, 0)),
            ],
            out_specs=pl.BlockSpec((bt, C, ts), lambda b, s: (b, 0, s)),
        ),
        compiler_params=pltpu.CompilerParams(
            dimension_semantics=("parallel", "parallel"),
            vmem_limit_bytes=vmem_limit),
    )(xf, w2, b2)
    return out.reshape(B, C, H, W)


# ----------------------------------------------------------------------------
# Pure-JAX references (mirror the PyTorch forward exactly)
# ----------------------------------------------------------------------------
def _ref_channels_last(x, w, b, eps):
    mean = jnp.mean(x, axis=-1, keepdims=True)
    var = jnp.mean((x - mean) ** 2, axis=-1, keepdims=True)
    return (x - mean) / jnp.sqrt(var + eps) * w + b


def _ref_channels_first(x, w, b, eps):
    u = jnp.mean(x, axis=1, keepdims=True)
    s = jnp.mean((x - u) ** 2, axis=1, keepdims=True)
    xn = (x - u) / jnp.sqrt(s + eps)
    return w[None, :, None, None] * xn + b[None, :, None, None]


if __name__ == "__main__":
    key = jax.random.PRNGKey(0)
    ks = jax.random.split(key, 12)
    eps = 1e-6

    # --- channels_first: NCHW, normalized over C = 4 -------------------------
    B, C, H, W = 2, 4, 16, 16
    x_cf = jax.random.normal(ks[0], (B, C, H, W), dtype=jnp.float32)
    w_cf = 1.0 + 0.1 * jax.random.normal(ks[1], (C,), dtype=jnp.float32)
    b_cf = 0.1 * jax.random.normal(ks[2], (C,), dtype=jnp.float32)
    y_cf = layer_norm_channels_first(x_cf, w_cf, b_cf, eps)
    jax.block_until_ready(y_cf)
    assert jnp.allclose(y_cf, _ref_channels_first(x_cf, w_cf, b_cf, eps),
                        atol=1e-4, rtol=1e-4)

    # --- channels_first with non-tile-multiple spatial dims (ragged lanes) ---
    x_cf2 = jax.random.normal(ks[3], (2, 4, 5, 7), dtype=jnp.float32)
    y_cf2 = layer_norm_channels_first(x_cf2, w_cf, b_cf, eps)
    jax.block_until_ready(y_cf2)
    assert jnp.allclose(y_cf2, _ref_channels_first(x_cf2, w_cf, b_cf, eps),
                        atol=1e-4, rtol=1e-4)

    # --- channels_last, small C dividing 128 -> packed MXU-segment path ------
    C2 = 32
    x_cl = jax.random.normal(ks[4], (2, 16, 16, C2), dtype=jnp.float32)
    w_cl = 1.0 + 0.1 * jax.random.normal(ks[5], (C2,), dtype=jnp.float32)
    b_cl = 0.1 * jax.random.normal(ks[6], (C2,), dtype=jnp.float32)
    y_cl = layer_norm_channels_last(x_cl, w_cl, b_cl, eps)
    jax.block_until_ready(y_cl)
    assert jnp.allclose(y_cl, _ref_channels_last(x_cl, w_cl, b_cl, eps),
                        atol=1e-4, rtol=1e-4)

    # --- channels_last, C >= 128 -> row-tiled lane-dense path ----------------
    C3 = 128
    x_cl2 = jax.random.normal(ks[7], (2, 8, C3), dtype=jnp.float32)
    w_cl2 = 1.0 + 0.1 * jax.random.normal(ks[8], (C3,), dtype=jnp.float32)
    b_cl2 = 0.1 * jax.random.normal(ks[9], (C3,), dtype=jnp.float32)
    y_cl2 = layer_norm_channels_last(x_cl2, w_cl2, b_cl2, eps)
    jax.block_until_ready(y_cl2)
    assert jnp.allclose(y_cl2, _ref_channels_last(x_cl2, w_cl2, b_cl2, eps),
                        atol=1e-4, rtol=1e-4)

    # --- channels_last, C not dividing 128 + ragged row count ----------------
    C4 = 48
    x_cl3 = jax.random.normal(ks[10], (2, 7, C4), dtype=jnp.float32)
    w_cl3 = 1.0 + 0.1 * jax.random.normal(ks[11], (C4,), dtype=jnp.float32)
    b_cl3 = 0.1 * jax.random.normal(ks[0], (C4,), dtype=jnp.float32)
    y_cl3 = layer_norm_channels_last(x_cl3, w_cl3, b_cl3, eps)
    jax.block_until_ready(y_cl3)
    assert jnp.allclose(y_cl3, _ref_channels_last(x_cl3, w_cl3, b_cl3, eps),
                        atol=1e-4, rtol=1e-4)

    print("KERNEL_OK")
</pallas_src>

<mosaic_0001>
module attributes {stable_mosaic.version = 11 : i64} {
  func.func @_ln_cfirst_kernel(%arg0: i32, %arg1: i32, %arg2: memref<2x4x256xf32, #tpu.memory_space<vmem>>, %arg3: memref<4x1xf32, #tpu.memory_space<vmem>>, %arg4: memref<4x1xf32, #tpu.memory_space<vmem>>, %arg5: memref<2x4x256xf32, #tpu.memory_space<vmem>>) attributes {dimension_semantics = [#tpu.dimension_semantics<parallel>, #tpu.dimension_semantics<parallel>], iteration_bounds = array<i64: 1, 1>, scalar_prefetch = 0 : i64, scratch_operands = 0 : i64, tpu.core_type = #tpu.core_type<tc>, window_params = [{transform_indices = @transform_0, window_bounds = array<i64: 2, 4, 256>}, {pipeline_mode = #tpu.pipeline_mode<synchronous>, transform_indices = @transform_1, window_bounds = array<i64: 4, 1>}, {pipeline_mode = #tpu.pipeline_mode<synchronous>, transform_indices = @transform_2, window_bounds = array<i64: 4, 1>}, {transform_indices = @transform_3, window_bounds = array<i64: 2, 4, 256>}]} {
    %c0 = arith.constant 0 : index
    %c0_0 = arith.constant 0 : index
    %c0_1 = arith.constant 0 : index
    %0 = vector.load %arg2[%c0, %c0_0, %c0_1] : memref<2x4x256xf32, #tpu.memory_space<vmem>>, vector<2x4x256xf32>
    %cst = arith.constant dense<0.000000e+00> : vector<2x256xf32>
    %1 = vector.multi_reduction <add>, %0, %cst [1] : vector<2x4x256xf32> to vector<2x256xf32>
    %2 = vector.shape_cast %1 : vector<2x256xf32> to vector<2x1x256xf32>
    %cst_2 = arith.constant 2.500000e-01 : f32
    %3 = vector.broadcast %cst_2 : f32 to vector<2x1x256xf32>
    %4 = arith.mulf %2, %3 : vector<2x1x256xf32>
    %5 = arith.mulf %0, %0 : vector<2x4x256xf32>
    %cst_3 = arith.constant dense<0.000000e+00> : vector<2x256xf32>
    %6 = vector.multi_reduction <add>, %5, %cst_3 [1] : vector<2x4x256xf32> to vector<2x256xf32>
    %7 = vector.shape_cast %6 : vector<2x256xf32> to vector<2x1x256xf32>
    %cst_4 = arith.constant 2.500000e-01 : f32
    %8 = vector.broadcast %cst_4 : f32 to vector<2x1x256xf32>
    %9 = arith.mulf %7, %8 : vector<2x1x256xf32>
    %10 = arith.mulf %4, %4 : vector<2x1x256xf32>
    %11 = arith.subf %9, %10 : vector<2x1x256xf32>
    %cst_5 = arith.constant 0.000000e+00 : f32
    %12 = vector.broadcast %cst_5 : f32 to vector<2x1x256xf32>
    %13 = arith.maximumf %11, %12 : vector<2x1x256xf32>
    %cst_6 = arith.constant 9.99999997E-7 : f32
    %14 = vector.broadcast %cst_6 : f32 to vector<2x1x256xf32>
    %15 = arith.addf %13, %14 : vector<2x1x256xf32>
    %16 = math.rsqrt %15 : vector<2x1x256xf32>
    %c0_7 = arith.constant 0 : index
    %c0_8 = arith.constant 0 : index
    %17 = vector.load %arg3[%c0_7, %c0_8] : memref<4x1xf32, #tpu.memory_space<vmem>>, vector<4x1xf32>
    %18 = vector.shape_cast %17 : vector<4x1xf32> to vector<1x4x1xf32>
    %c0_9 = arith.constant 0 : index
    %c0_10 = arith.constant 0 : index
    %19 = vector.load %arg4[%c0_9, %c0_10] : memref<4x1xf32, #tpu.memory_space<vmem>>, vector<4x1xf32>
    %20 = vector.shape_cast %19 : vector<4x1xf32> to vector<1x4x1xf32>
    %21 = vector.broadcast %4 : vector<2x1x256xf32> to vector<2x4x256xf32>
    %22 = arith.subf %0, %21 : vector<2x4x256xf32>
    %23 = vector.broadcast %16 : vector<2x1x256xf32> to vector<2x4x256xf32>
    %24 = arith.mulf %22, %23 : vector<2x4x256xf32>
    %25 = vector.broadcast %18 : vector<1x4x1xf32> to vector<2x4x256xf32>
    %26 = arith.mulf %24, %25 : vector<2x4x256xf32>
    %27 = vector.broadcast %20 : vector<1x4x1xf32> to vector<2x4x256xf32>
    %28 = arith.addf %26, %27 : vector<2x4x256xf32>
    %c0_11 = arith.constant 0 : index
    %c0_12 = arith.constant 0 : index
    %c0_13 = arith.constant 0 : index
    %29 = vector.load %arg5[%c0_11, %c0_12, %c0_13] : memref<2x4x256xf32, #tpu.memory_space<vmem>>, vector<2x4x256xf32>
    tpu.vector_store %arg5[%c0_11, %c0_12, %c0_13], %28 {strides = array<i32>} : memref<2x4x256xf32, #tpu.memory_space<vmem>>, vector<2x4x256xf32>,
    return
  }
  func.func @transform_0(%arg0: i32, %arg1: i32) -> (i32, i32, i32) {
    %c0_i32 = arith.constant 0 : i32
    %c0_i32_0 = arith.constant 0 : i32
    return %arg0, %c0_i32, %arg1 : i32, i32, i32
  }
  func.func @transform_1(%arg0: i32, %arg1: i32) -> (i32, i32) {
    %c0_i32 = arith.constant 0 : i32
    %c0_i32_0 = arith.constant 0 : i32
    %c0_i32_1 = arith.constant 0 : i32
    return %c0_i32, %c0_i32_0 : i32, i32
  }
  func.func @transform_2(%arg0: i32, %arg1: i32) -> (i32, i32) {
    %c0_i32 = arith.constant 0 : i32
    %c0_i32_0 = arith.constant 0 : i32
    %c0_i32_1 = arith.constant 0 : i32
    return %c0_i32, %c0_i32_0 : i32, i32
  }
  func.func @transform_3(%arg0: i32, %arg1: i32) -> (i32, i32, i32) {
    %c0_i32 = arith.constant 0 : i32
    %c0_i32_0 = arith.constant 0 : i32
    return %arg0, %c0_i32, %arg1 : i32, i32, i32
  }
}

</mosaic_0001>

<llo_original>
// kernel: tpu_custom_call.1
$region0: #{tpu_custom_call.1}
  #allocation0 [shape = 'u32[]', space=smem, size = 0x4, offset = 0x4, fixed_abs, tag = 'smem constant byte address 0x4 - core index']
  #allocation1 [shape = 'u32[144,128]{1,0:T(1,128)}', space=vmem, size = 0x12000, scoped, tag = 'internal scratch']
  %s0 = inlined_call_operand.hbm [shape: f32[2,4,256], index: 0, kind: input, shape index: {}]
  %s1 = inlined_call_operand.hbm [shape: f32[4,1], index: 1, kind: input, shape index: {}]
  %s2 = inlined_call_operand.hbm [shape: f32[4,1], index: 2, kind: input, shape index: {}]
  %s3 = inlined_call_operand.hbm [shape: f32[2,4,256], index: 3, kind: output, shape index: {}]
  %s4 = sld [smem:[#allocation0]]
  $region34: #{tpu_custom_call.1} parent=0
    _
  %s6 = ssub.s32 1, %s4
  %s7 = scalar_select 0, %s6, %s4
  $region1: #{tpu_custom_call.1} parent=0
    #allocation2 [shape = 'u8[8192]{0}', space=vmem, size = 0x2000, scoped, tag = 'input window, operand 0, single buffered']
    #allocation3 [shape = 's32[1]{0}', space=sflag, size = 0x4, scoped, tag = 'scoped memory for tpu_custom_call.1']
    #allocation4 [shape = 's32[1]{0}', space=sflag, size = 0x4, scoped, tag = 'scoped memory for tpu_custom_call.1']
    #allocation5 [shape = 'u8[2048]{0}', space=vmem, size = 0x800, scoped, tag = 'input window, operand 1, single buffered']
    #allocation6 [shape = 's32[1]{0}', space=sflag, size = 0x4, scoped, tag = 'scoped memory for tpu_custom_call.1']
    #allocation7 [shape = 'u8[2048]{0}', space=vmem, size = 0x800, scoped, tag = 'input window, operand 2, single buffered']
    #allocation8 [shape = 'u8[8192]{0}', space=vmem, size = 0x2000, scoped, tag = 'output window, operand 0, single buffered']
    %8 = vsyncpa [#allocation3], 0
    %9 = vsyncpa [#allocation6], 0
    %10 = vsyncpa [#allocation4], 0
    // Predicated region
    $region2: #{tpu_custom_call.1} parent=1 // pred_check
      _
    $region3: #{tpu_custom_call.1} parent=1 // pred_check_branch
      %12 = sbr.rel (0) target = $region5
    $region4: #{tpu_custom_call.1} parent=1 // pred_region
      %s14 = ssub.s32 256, 256
      %15 = vsyncadd [#allocation3], %s14
      %s16 = sshll.u32 [#allocation2], 4
      %s17 = int_to_ptr.vmem [resolvable:$true] %s16
      %22 = dma.hbm_to_vmem [thread:$0]  %s0, 256, %s17, [#allocation3], 128, 128, 8
    $region5: #{tpu_custom_call.1} parent=1 // pred_fallthru
      _
    // Predicated region
    $region6: #{tpu_custom_call.1} parent=1 // pred_check
      _
    $region7: #{tpu_custom_call.1} parent=1 // pred_check_branch
      %24 = sbr.rel (0) target = $region9
    $region8: #{tpu_custom_call.1} parent=1 // pred_region
      %s26 = ssub.s32 64, 64
      %27 = vsyncadd [#allocation6], %s26
      %s29 = sshll.u32 [#allocation5], 4
      %s30 = int_to_ptr.vmem [resolvable:$true] %s29
      %32 = dma.hbm_to_vmem [thread:$0]  %s1, 64, %s30, [#allocation6]
    $region9: #{tpu_custom_call.1} parent=1 // pred_fallthru
      _
    // Predicated region
    $region10: #{tpu_custom_call.1} parent=1 // pred_check
      _
    $region11: #{tpu_custom_call.1} parent=1 // pred_check_branch
      %34 = sbr.rel (0) target = $region13
    $region12: #{tpu_custom_call.1} parent=1 // pred_region
      %s36 = ssub.s32 64, 64
      %37 = vsyncadd [#allocation6], %s36
      %s39 = sshll.u32 [#allocation7], 4
      %s40 = int_to_ptr.vmem [resolvable:$true] %s39
      %42 = dma.hbm_to_vmem [thread:$0]  %s2, 64, %s40, [#allocation6]
    $region13: #{tpu_custom_call.1} parent=1 // pred_fallthru
      _
    // Predicated region
    $region14: #{tpu_custom_call.1} parent=1 // pred_check
      _
    $region15: #{tpu_custom_call.1} parent=1 // pred_check_branch
      %44 = sbr.rel (0) target = $region17
    $region16: #{tpu_custom_call.1} parent=1 // pred_region
      %45 = dma.done [#allocation3], 256
    $region17: #{tpu_custom_call.1} parent=1 // pred_fallthru
      _
    // Predicated region
    $region18: #{tpu_custom_call.1} parent=1 // pred_check
      _
    $region19: #{tpu_custom_call.1} parent=1 // pred_check_branch
      %47 = sbr.rel (0) target = $region21
    $region20: #{tpu_custom_call.1} parent=1 // pred_region
      %48 = dma.done [#allocation6], 64
    $region21: #{tpu_custom_call.1} parent=1 // pred_fallthru
      _
    // Predicated region
    $region22: #{tpu_custom_call.1} parent=1 // pred_check
      _
    $region23: #{tpu_custom_call.1} parent=1 // pred_check_branch
      %50 = sbr.rel (0) target = $region25
    $region24: #{tpu_custom_call.1} parent=1 // pred_region
      %51 = dma.done [#allocation6], 64
    $region25: #{tpu_custom_call.1} parent=1 // pred_fallthru
      _
    %v52 = vld [vmem:[#allocation2] sm:$0xff]
    %v53 = vld [vmem:[#allocation2 + $0x8] sm:$0xff]
    %v56 = vcombine.high %v52, %v52
    %v57 = vcombine.high %v53, %v53
    %vm60 = vcmask 1043456
    %v61 = vsel %vm60, %v52, 0.0
    %v62 = vrot.slane %v61, 4
    %v63 = vadd.f32 %v61, %v62
    %v64 = vrot.slane %v63, 2
    %v65 = vadd.f32 %v63, %v64
    %v66 = vrot.slane %v65, 1
    %v67 = vadd.f32 %v65, %v66
    %v68 = vsel %vm60, %v56, 0.0
    %v69 = vrot.slane %v68, 4
    %v70 = vadd.f32 %v68, %v69
    %v71 = vrot.slane %v70, 2
    %v72 = vadd.f32 %v70, %v71
    %v73 = vrot.slane %v72, 1
    %v74 = vadd.f32 %v72, %v73
    %v75 = vsel %vm60, %v53, 0.0
    %v76 = vrot.slane %v75, 4
    %v77 = vadd.f32 %v75, %v76
    %v78 = vrot.slane %v77, 2
    %v79 = vadd.f32 %v77, %v78
    %v80 = vrot.slane %v79, 1
    %v81 = vadd.f32 %v79, %v80
    %v82 = vsel %vm60, %v57, 0.0
    %v83 = vrot.slane %v82, 4
    %v84 = vadd.f32 %v82, %v83
    %v85 = vrot.slane %v84, 2
    %v86 = vadd.f32 %v84, %v85
    %v87 = vrot.slane %v86, 1
    %v88 = vadd.f32 %v86, %v87
    %v89 = vmul.f32 %v67, 0.25
    %v90 = vmul.f32 %v74, 0.25
    %v91 = vmul.f32 %v81, 0.25
    %v92 = vmul.f32 %v88, 0.25
    %v93 = vmul.f32 %v52, %v52
    %v94 = vmul.f32 %v53, %v53
    %v97 = vcombine.high %v93, %v93
    %v98 = vcombine.high %v94, %v94
    %v101 = vsel %vm60, %v93, 0.0
    %v102 = vrot.slane %v101, 4
    %v103 = vadd.f32 %v101, %v102
    %v104 = vrot.slane %v103, 2
    %v105 = vadd.f32 %v103, %v104
    %v106 = vrot.slane %v105, 1
    %v107 = vadd.f32 %v105, %v106
    %v108 = vsel %vm60, %v97, 0.0
    %v109 = vrot.slane %v108, 4
    %v110 = vadd.f32 %v108, %v109
    %v111 = vrot.slane %v110, 2
    %v112 = vadd.f32 %v110, %v111
    %v113 = vrot.slane %v112, 1
    %v114 = vadd.f32 %v112, %v113
    %v115 = vsel %vm60, %v94, 0.0
    %v116 = vrot.slane %v115, 4
    %v117 = vadd.f32 %v115, %v116
    %v118 = vrot.slane %v117, 2
    %v119 = vadd.f32 %v117, %v118
    %v120 = vrot.slane %v119, 1
    %v121 = vadd.f32 %v119, %v120
    %v122 = vsel %vm60, %v98, 0.0
    %v123 = vrot.slane %v122, 4
    %v124 = vadd.f32 %v122, %v123
    %v125 = vrot.slane %v124, 2
    %v126 = vadd.f32 %v124, %v125
    %v127 = vrot.slane %v126, 1
    %v128 = vadd.f32 %v126, %v127
    %v129 = vmul.f32 %v107, 0.25
    %v130 = vmul.f32 %v114, 0.25
    %v131 = vmul.f32 %v121, 0.25
    %v132 = vmul.f32 %v128, 0.25
    %v133 = vmul.f32 %v89, %v89
    %v134 = vmul.f32 %v90, %v90
    %v135 = vmul.f32 %v91, %v91
    %v136 = vmul.f32 %v92, %v92
    %v137 = vsub.f32 %v129, %v133
    %v138 = vsub.f32 %v130, %v134
    %v139 = vsub.f32 %v131, %v135
    %v140 = vsub.f32 %v132, %v136
    %v141 = vmax.f32 %v137, 0.0
    %v142 = vmax.f32 %v138, 0.0
    %v143 = vmax.f32 %v139, 0.0
    %v144 = vmax.f32 %v140, 0.0
    %v145 = vadd.f32 %v141, 1e-06
    %v146 = vadd.f32 %v142, 1e-06
    %v147 = vadd.f32 %v143, 1e-06
    %v148 = vadd.f32 %v144, 1e-06
    %v149 = vrsqrt.pop %v145
    %v150 = vrsqrt.pop %v146
    %v151 = vrsqrt.pop %v147
    %v152 = vrsqrt.pop %v148
    %v153 = vld [vmem:[#allocation5] sm:$0xf]
    %v154 = vld [vmem:[#allocation7] sm:$0xf]
    %v159 = vcombine.low %v89, %v90
    %v160 = vcombine.low %v91, %v92
    %v163 = vsub.f32 %v52, %v159
    %v164 = vsub.f32 %v53, %v160
    %v169 = vcombine.low %v149, %v150
    %v170 = vcombine.low %v151, %v152
    %v173 = vmul.f32 %v163, %v169
    %v174 = vmul.f32 %v164, %v170
    %176 = vset.pattern.permute.xlu0 0
    %177 = vperm.xlu0 %176, %v153
    %v178 = vpop.permute.xlu0 %177
    %v180 = vunpack.c.l.s4 839922192
    %v181 = vunpack.c.0.s8 %v180
    %v182 = vlaneseq
    %v183 = vshrl.u32 %v182, 7
    %v184 = vsub.s32 %v181, %v183
    %v185 = vrot.slane %v178, %v184
    %v187 = vmul.f32 %v173, %v185
    %v188 = vmul.f32 %v174, %v185
    %190 = vset.pattern.permute.xlu0 0
    %191 = vperm.xlu0 %190, %v154
    %v192 = vpop.permute.xlu0 %191
    %v194 = vunpack.c.l.s4 839922192
    %v195 = vunpack.c.0.s8 %v194
    %v196 = vlaneseq
    %v197 = vshrl.u32 %v196, 7
    %v198 = vsub.s32 %v195, %v197
    %v199 = vrot.slane %v192, %v198
    %v201 = vadd.f32 %v187, %v199
    %v202 = vadd.f32 %v188, %v199
    %203 = vst [vmem:[#allocation8] sm:$0xff] %v201
    %204 = vst [vmem:[#allocation8 + $0x8] sm:$0xff] %v202
    // Predicated region
    $region26: #{tpu_custom_call.1} parent=1 // pred_check
      _
    $region27: #{tpu_custom_call.1} parent=1 // pred_check_branch
      %206 = sbr.rel (0) target = $region29
    $region28: #{tpu_custom_call.1} parent=1 // pred_region
      %s208 = ssub.s32 256, 256
      %209 = vsyncadd [#allocation4], %s208
      %s210 = sshll.u32 [#allocation8], 4
      %s211 = int_to_ptr.vmem [resolvable:$true] %s210
      %216 = dma.vmem_to_hbm [thread:$0]  %s211, 256, %s3, [#allocation4], 128, 128, 8
    $region29: #{tpu_custom_call.1} parent=1 // pred_fallthru
      _
    // Predicated region
    $region30: #{tpu_custom_call.1} parent=1 // pred_check
      _
    $region31: #{tpu_custom_call.1} parent=1 // pred_check_branch
      %218 = sbr.rel (0) target = $region33
    $region32: #{tpu_custom_call.1} parent=1 // pred_region
      %219 = dma.done [#allocation4], 256
    $region33: #{tpu_custom_call.1} parent=1 // pred_fallthru
      _
    %220 = vsyncpa [#allocation3], 1
    %221 = vsyncpa [#allocation6], 1
    %222 = vsyncpa [#allocation4], 1

</llo_original>
